<compile_context>
chip_gen: v5e
topology: v5e:2x2
jax: 0.10.0
libtpu: 0.0.40
codegen_flags: <defaults>
</compile_context>

<pallas_src>
import functools
import math

import jax
import jax.numpy as jnp
from jax.experimental import pallas as pl
from jax.experimental.pallas import tpu as pltpu


def _round_up(x, m):
    return ((x + m - 1) // m) * m


def _device_kind():
    try:
        return jax.devices()[0].device_kind.lower()
    except Exception:  # pragma: no cover
        return ""


def _is_v7x(kind):
    return "v7" in kind


def _exp_dtype_for(kind):
    # bf16 VPU/EUP exists on v6e/v7x only; keep f32 elsewhere (v5e etc.).
    if ("v6" in kind) or ("v7" in kind):
        return jnp.bfloat16
    return jnp.float32


# --------------------------------------------------------------------------
# Kernel 1: fused projection  hWc = h @ [W | W@a1 | W@a2]
#   -> Wh (bf16, lane-dense F) and the two attention scalars per node (f32).
# --------------------------------------------------------------------------
def _proj_kernel(h_ref, wc_ref, wh_ref, f12_ref, *, fp):
    h = h_ref[...]                                               # [tp, Cin] f32
    wc = wc_ref[...]                                             # [Cin, fp+128]
    hw = jnp.dot(h, wc, preferred_element_type=jnp.float32)      # [tp, fp+128]
    wh_ref[...] = hw[:, :fp].astype(wh_ref.dtype)                # Wh as bf16
    f12_ref[...] = hw[:, fp:]                                    # col0=f1, col1=f2


# --------------------------------------------------------------------------
# Kernel 2: tiled GAT attention with precomputed per-row stabilizer.
#   grid = (row blocks i [parallel], neighbor blocks j [arbitrary])
# --------------------------------------------------------------------------
def _gat_attn_kernel(f1_ref, m_ref, f2_ref, adj_ref, wh_ref, o_ref,
                     l_sc, acc_sc, *, alpha, exp_dtype, wh_resident, tj):
    j = pl.program_id(1)

    @pl.when(j == 0)
    def _():
        l_sc[...] = jnp.zeros_like(l_sc)
        acc_sc[...] = jnp.zeros_like(acc_sc)

    # attention logits for this (i, j) tile (f32 adds, cheap)
    e = f1_ref[...] + f2_ref[...]                     # [ti, tj] via broadcast
    e = jnp.maximum(e, alpha * e)                     # LeakyReLU, 0 < alpha < 1

    # stabilized, masked, unnormalized probabilities; exp in bf16 on v6e/v7x
    p = jnp.exp((e - m_ref[...]).astype(exp_dtype))
    p = p * adj_ref[...].astype(exp_dtype)            # int8 0/1 edge mask

    l_sc[...] += jnp.sum(p, axis=1, keepdims=True, dtype=jnp.float32)

    if wh_resident:
        off = pl.multiple_of(j * tj, tj)
        wh = wh_ref[pl.ds(off, tj), :]                 # slice of VMEM-resident Wh
    else:
        wh = wh_ref[...]                               # streamed (tj, fp) tile
    acc_sc[...] += jnp.dot(p.astype(jnp.bfloat16), wh,
                           preferred_element_type=jnp.float32)

    # (attention dropout skipped -- eval mode)

    @pl.when(j == pl.num_programs(1) - 1)
    def _():
        denom = jnp.maximum(l_sc[...], 1e-30)          # guard isolated nodes
        h_prime = acc_sc[...] * pl.reciprocal(denom, approx=True)
        # relu(elu(x)) == relu(x) exactly -> ELU removed
        o_ref[...] = jnp.maximum(h_prime, 0.0).astype(o_ref.dtype)


def _pick_tiles(N):
    """Return (n_pad, ti, tj). ti,tj divide n_pad; ti gives >=2 row blocks
    (megacore) whenever N > 128."""
    if N <= 128:
        return 128, 128, 128
    if N <= 256:
        return 256, 128, 256
    n_pad = _round_up(N, 512)
    tj = 512
    ti = 512 if n_pad >= 2048 else 256
    return n_pad, ti, tj


def _attn_vmem_limit(ti, tj, fp, wh_bytes, is_v7x):
    # double-buffered input/output tiles + (possibly resident) Wh + scratch,
    # with headroom; clamped per generation.
    per_step = (ti * 4          # f1 tile
                + ti * 4        # m tile
                + tj * 4        # f2 tile
                + ti * tj * 1   # adj mask tile (int8)
                + ti * fp * 4)  # output tile (f32)
    scratch = ti * 4 + ti * fp * 4
    need = 2 * per_step + 2 * wh_bytes + scratch
    cap = (48 << 20) if is_v7x else (100 << 20)
    return int(min(max(2 * need, 16 << 20), cap))


# --------------------------------------------------------------------------
# Wrappers
# --------------------------------------------------------------------------
def gat_conv(h, adj, W, a, *, alpha=0.2):
    """GATConv forward (single head, concat=True, act='relu', norm=None)."""
    N, c_in = h.shape
    c_in_w, F = W.shape
    assert c_in == c_in_w and a.shape == (2 * F, 1) and adj.shape == (N, N)

    kind = _device_kind()
    exp_dtype = _exp_dtype_for(kind)
    is_v7x = _is_v7x(kind)

    # --- tiling / padding (lane-dense feature dim, tile-aligned node dim) ----
    n_pad, ti, tj = _pick_tiles(N)
    fp = _round_up(F, 128)
    n_blk_i = n_pad // ti
    n_blk_j = n_pad // tj

    # --- glue (plain JAX, not in hot path): fold a1/a2 into projection -------
    a1 = a[:F, :].astype(jnp.float32)                       # [F, 1]
    a2 = a[F:, :].astype(jnp.float32)                       # [F, 1]
    w32 = W.astype(jnp.float32)
    w_pad = jnp.zeros((c_in, fp), jnp.float32).at[:, :F].set(w32)
    wf = jnp.zeros((c_in, 128), jnp.float32)
    wf = wf.at[:, 0:1].set(w32 @ a1)                        # -> f1 column
    wf = wf.at[:, 1:2].set(w32 @ a2)                        # -> f2 column
    wc = jnp.concatenate([w_pad, wf], axis=1)               # [Cin, fp+128]

    h_pad = jnp.zeros((n_pad, c_in), jnp.float32).at[:N, :].set(
        h.astype(jnp.float32))
    # 0/1 edge mask, int8 (1 byte/elem of the dominant N^2 stream);
    # padded region = 0.  (Hoist/reuse across layers when stacking blocks.)
    mask = jnp.zeros((n_pad, n_pad), jnp.int8).at[:N, :N].set(
        (adj > 0).astype(jnp.int8))

    # --- kernel 1: projection -------------------------------------------------
    wh, f12 = pl.pallas_call(
        functools.partial(_proj_kernel, fp=fp),
        out_shape=(jax.ShapeDtypeStruct((n_pad, fp), jnp.bfloat16),
                   jax.ShapeDtypeStruct((n_pad, 128), jnp.float32)),
        grid_spec=pltpu.PrefetchScalarGridSpec(
            num_scalar_prefetch=0,
            grid=(n_pad // ti,),
            in_specs=[pl.BlockSpec((ti, c_in), lambda i: (i, 0)),
                      pl.BlockSpec((c_in, fp + 128), lambda i: (0, 0))],
            out_specs=[pl.BlockSpec((ti, fp), lambda i: (i, 0)),
                       pl.BlockSpec((ti, 128), lambda i: (i, 0))]),
        compiler_params=pltpu.CompilerParams(
            dimension_semantics=("parallel",)),
    )(h_pad, wc)

    f1 = f12[:, 0:1]                       # [n_pad, 1]
    f2 = jnp.transpose(f12[:, 1:2])        # [1, n_pad]
    # exact per-row (unmasked) max of e: leakyrelu is monotone, so
    # max_j leakyrelu(f1_i + f2_j) = leakyrelu(f1_i + max_j f2_j).
    f2max = jnp.max(f12[:N, 1])            # scalar over valid nodes
    z = f1 + f2max
    m = jnp.maximum(z, alpha * z)          # [n_pad, 1] stabilizer

    # --- Wh residency decision -------------------------------------------------
    wh_bytes = n_pad * fp * 2
    wh_resident = wh_bytes <= (8 << 20)
    if wh_resident:
        wh_spec = pl.BlockSpec((n_pad, fp), lambda i, j: (0, 0))
    else:
        wh_spec = pl.BlockSpec((tj, fp), lambda i, j: (j, 0))

    # --- kernel 2: tiled attention + aggregation + ReLU ------------------------
    wh_stream_bytes = wh_bytes if wh_resident else n_blk_i * n_pad * fp * 2
    cost = pl.CostEstimate(
        flops=2 * n_pad * n_pad * fp + 6 * n_pad * n_pad,
        transcendentals=n_pad * n_pad,
        bytes_accessed=n_pad * n_pad * 1 + wh_stream_bytes
        + n_pad * fp * 4 + n_pad * 12)

    out_pad = pl.pallas_call(
        functools.partial(_gat_attn_kernel, alpha=float(alpha),
                          exp_dtype=exp_dtype, wh_resident=wh_resident, tj=tj),
        out_shape=jax.ShapeDtypeStruct((n_pad, fp), jnp.float32),
        grid_spec=pltpu.PrefetchScalarGridSpec(
            num_scalar_prefetch=0,
            grid=(n_blk_i, n_blk_j),
            in_specs=[pl.BlockSpec((ti, 1), lambda i, j: (i, 0)),    # f1
                      pl.BlockSpec((ti, 1), lambda i, j: (i, 0)),    # m
                      pl.BlockSpec((1, tj), lambda i, j: (0, j)),    # f2
                      pl.BlockSpec((ti, tj), lambda i, j: (i, j)),   # mask int8
                      wh_spec],                                      # Wh
            out_specs=pl.BlockSpec((ti, fp), lambda i, j: (i, 0)),
            scratch_shapes=[pltpu.VMEM((ti, 1), jnp.float32),
                            pltpu.VMEM((ti, fp), jnp.float32)]),
        compiler_params=pltpu.CompilerParams(
            dimension_semantics=("parallel", "arbitrary"),
            vmem_limit_bytes=_attn_vmem_limit(ti, tj, fp, wh_bytes, is_v7x)),
        cost_estimate=cost,
    )(f1, m, f2, mask, wh)

    return out_pad[:N, :F]


def dense_graph_block(x, adj, W, a, *, alpha=0.2):
    """DenseGraphBlock forward: concat(input, GATConv(input, adj))."""
    dense = gat_conv(x, adj, W, a, alpha=alpha)
    return jnp.concatenate([x.astype(dense.dtype), dense], axis=1)


# --------------------------------------------------------------------------
# Reference (pure JAX, eval mode) and driver
# --------------------------------------------------------------------------
def _reference(h, adj, W, a, alpha):
    F = W.shape[1]
    Wh = h @ W
    f1 = Wh @ a[:F, :]
    f2 = Wh @ a[F:, :]
    e = f1 + jnp.transpose(f2)
    e = jnp.where(e > 0, e, alpha * e)
    att = jnp.where(adj > 0, e, -9.0e15)
    att = jax.nn.softmax(att, axis=1)
    hp = att @ Wh
    elu = jnp.where(hp > 0, hp, jnp.exp(hp) - 1.0)
    dense = jnp.maximum(elu, 0.0)
    return jnp.concatenate([h, dense], axis=1)


def _xavier_uniform(key, shape, gain):
    fan_in, fan_out = shape[1], shape[0]  # PyTorch convention for 2-D tensors
    bound = gain * math.sqrt(6.0 / (fan_in + fan_out))
    return jax.random.uniform(key, shape, minval=-bound, maxval=bound,
                              dtype=jnp.float32)


if __name__ == "__main__":
    # small, deterministic config
    N = 16              # number of graph nodes
    in_channels = 8
    out_channels = 32
    alpha = 0.2

    root = jax.random.PRNGKey(0)
    k_h, k_adj, k_w, k_a = jax.random.split(root, 4)

    # inputs
    h = jax.random.normal(k_h, (N, in_channels), dtype=jnp.float32)
    adj = (jax.random.uniform(k_adj, (N, N)) > 0.5).astype(jnp.float32)
    adj = jnp.maximum(adj, jnp.eye(N, dtype=jnp.float32))   # self loops

    # parameters (xavier_uniform_ with gain=1.414, as in __init__)
    W = _xavier_uniform(k_w, (in_channels, out_channels), gain=1.414)
    a = _xavier_uniform(k_a, (2 * out_channels, 1), gain=1.414)

    out = dense_graph_block(h, adj, W, a, alpha=alpha)
    jax.block_until_ready(out)

    assert out.shape == (N, in_channels + out_channels)
    assert out.dtype == jnp.float32

    # validate against pure-JAX reference (loose tol: bf16 MXU operands,
    # bf16 exp on v6e/v7x, approx reciprocal)
    ref = _reference(h, adj, W, a, alpha)
    max_err = float(jnp.max(jnp.abs(out - ref)))
    assert max_err < 1e-1, f"max abs err {max_err}"

    print("KERNEL_OK")
</pallas_src>

<mosaic_0001>
module attributes {stable_mosaic.version = 11 : i64} {
  func.func @_proj_kernel(%arg0: i32, %arg1: memref<128x8xf32, #tpu.memory_space<vmem>>, %arg2: memref<8x256xf32, #tpu.memory_space<vmem>>, %arg3: memref<128x128xbf16, #tpu.memory_space<vmem>>, %arg4: memref<128x128xf32, #tpu.memory_space<vmem>>) attributes {dimension_semantics = [#tpu.dimension_semantics<parallel>], iteration_bounds = array<i64: 1>, scalar_prefetch = 0 : i64, scratch_operands = 0 : i64, tpu.core_type = #tpu.core_type<tc>, window_params = [{transform_indices = @transform_0, window_bounds = array<i64: 128, 8>}, {pipeline_mode = #tpu.pipeline_mode<synchronous>, transform_indices = @transform_1, window_bounds = array<i64: 8, 256>}, {transform_indices = @transform_2, window_bounds = array<i64: 128, 128>}, {transform_indices = @transform_3, window_bounds = array<i64: 128, 128>}]} {
    %c0 = arith.constant 0 : index
    %c0_0 = arith.constant 0 : index
    %0 = vector.load %arg1[%c0, %c0_0] : memref<128x8xf32, #tpu.memory_space<vmem>>, vector<128x8xf32>
    %c0_1 = arith.constant 0 : index
    %c0_2 = arith.constant 0 : index
    %1 = vector.load %arg2[%c0_1, %c0_2] : memref<8x256xf32, #tpu.memory_space<vmem>>, vector<8x256xf32>
    %cst = arith.constant dense<0.000000e+00> : vector<128x256xf32>
    %2 = tpu.matmul %0, %1, %cst {dimension_numbers = #tpu.dot_dimension_numbers<[1], [0], [0], [1], [0, 0, 1, 1], [], []>} : vector<128x8xf32>, vector<8x256xf32>, vector<128x256xf32> -> vector<128x256xf32>
    %3 = vector.extract_strided_slice %2 {offsets = [0, 0], sizes = [128, 128], strides = [1, 1]} : vector<128x256xf32> to vector<128x128xf32>
    %4 = arith.truncf %3 : vector<128x128xf32> to vector<128x128xbf16>
    %c0_3 = arith.constant 0 : index
    %c0_4 = arith.constant 0 : index
    %5 = vector.load %arg3[%c0_3, %c0_4] : memref<128x128xbf16, #tpu.memory_space<vmem>>, vector<128x128xbf16>
    tpu.vector_store %arg3[%c0_3, %c0_4], %4 {strides = array<i32>} : memref<128x128xbf16, #tpu.memory_space<vmem>>, vector<128x128xbf16>,
    %6 = vector.extract_strided_slice %2 {offsets = [0, 128], sizes = [128, 128], strides = [1, 1]} : vector<128x256xf32> to vector<128x128xf32>
    %c0_5 = arith.constant 0 : index
    %c0_6 = arith.constant 0 : index
    %7 = vector.load %arg4[%c0_5, %c0_6] : memref<128x128xf32, #tpu.memory_space<vmem>>, vector<128x128xf32>
    tpu.vector_store %arg4[%c0_5, %c0_6], %6 {strides = array<i32>} : memref<128x128xf32, #tpu.memory_space<vmem>>, vector<128x128xf32>,
    return
  }
  func.func @transform_0(%arg0: i32) -> (i32, i32) {
    %c0_i32 = arith.constant 0 : i32
    %c0_i32_0 = arith.constant 0 : i32
    return %arg0, %c0_i32 : i32, i32
  }
  func.func @transform_1(%arg0: i32) -> (i32, i32) {
    %c0_i32 = arith.constant 0 : i32
    %c0_i32_0 = arith.constant 0 : i32
    %c0_i32_1 = arith.constant 0 : i32
    return %c0_i32, %c0_i32_0 : i32, i32
  }
  func.func @transform_2(%arg0: i32) -> (i32, i32) {
    %c0_i32 = arith.constant 0 : i32
    %c0_i32_0 = arith.constant 0 : i32
    return %arg0, %c0_i32 : i32, i32
  }
  func.func @transform_3(%arg0: i32) -> (i32, i32) {
    %c0_i32 = arith.constant 0 : i32
    %c0_i32_0 = arith.constant 0 : i32
    return %arg0, %c0_i32 : i32, i32
  }
}

</mosaic_0001>

<llo_original>
// kernel: tpu_custom_call.1
$region0: #{tpu_custom_call.1}
  #allocation0 [shape = 'u32[]', space=smem, size = 0x4, offset = 0x4, fixed_abs, tag = 'smem constant byte address 0x4 - core index']
  #allocation1 [shape = 'u32[72,128]{1,0:T(1,128)}', space=vmem, size = 0x9000, scoped, tag = 'internal scratch']
  %s0 = inlined_call_operand.vmem [shape: f32[128,8], index: 0, kind: input, shape index: {}]
  %s1 = inlined_call_operand.vmem [shape: f32[8,256], index: 1, kind: input, shape index: {}]
  %s2 = inlined_call_operand.hbm [shape: bf16[128,128], index: 2, kind: output, shape index: {0}]
  %s3 = inlined_call_operand.hbm [shape: f32[128,128], index: 3, kind: output, shape index: {1}]
  %4 = xla_tuple %s2, %s3
  %s5 = sld [smem:[#allocation0]]
  $region26: #{tpu_custom_call.1} parent=0
    _
  %s7 = ssub.s32 1, %s5
  %s8 = scalar_select 0, %s7, %s5
  $region1: #{tpu_custom_call.1} parent=0
    #allocation2 [shape = 'u8[32768]{0}', space=vmem, size = 0x8000, scoped, tag = 'output window, operand 0, single buffered']
    #allocation3 [shape = 's32[1]{0}', space=sflag, size = 0x4, scoped, tag = 'scoped memory for tpu_custom_call.1']
    #allocation4 [shape = 'u8[65536]{0}', space=vmem, size = 0x10000, scoped, tag = 'output window, operand 1, single buffered']
    #allocation5 [shape = 's32[1]{0}', space=sflag, size = 0x4, scoped, tag = 'scoped memory for tpu_custom_call.1']
    %9 = vsyncpa [#allocation3], 0
    %10 = vsyncpa [#allocation5], 0
    // Predicated region
    $region2: #{tpu_custom_call.1} parent=1 // pred_check
      _
    $region3: #{tpu_custom_call.1} parent=1 // pred_check_branch
      %12 = sbr.rel (0) target = $region5
    $region4: #{tpu_custom_call.1} parent=1 // pred_region
      _
    $region5: #{tpu_custom_call.1} parent=1 // pred_fallthru
      _
    // Predicated region
    $region6: #{tpu_custom_call.1} parent=1 // pred_check
      _
    $region7: #{tpu_custom_call.1} parent=1 // pred_check_branch
      %14 = sbr.rel (0) target = $region9
    $region8: #{tpu_custom_call.1} parent=1 // pred_region
      _
    $region9: #{tpu_custom_call.1} parent=1 // pred_fallthru
      _
    %v15 = vld [vmem:[%s0] sm:$0xff]
    %v16 = vld [vmem:[%s0 + $0x8] sm:$0xff]
    %v17 = vld [vmem:[%s0 + $0x10] sm:$0xff]
    %v18 = vld [vmem:[%s0 + $0x18] sm:$0xff]
    %v19 = vld [vmem:[%s0 + $0x20] sm:$0xff]
    %v20 = vld [vmem:[%s0 + $0x28] sm:$0xff]
    %v21 = vld [vmem:[%s0 + $0x30] sm:$0xff]
    %v22 = vld [vmem:[%s0 + $0x38] sm:$0xff]
    %v23 = vld [vmem:[%s0 + $0x40] sm:$0xff]
    %v24 = vld [vmem:[%s0 + $0x48] sm:$0xff]
    %v25 = vld [vmem:[%s0 + $0x50] sm:$0xff]
    %v26 = vld [vmem:[%s0 + $0x58] sm:$0xff]
    %v27 = vld [vmem:[%s0 + $0x60] sm:$0xff]
    %v28 = vld [vmem:[%s0 + $0x68] sm:$0xff]
    %v29 = vld [vmem:[%s0 + $0x70] sm:$0xff]
    %v30 = vld [vmem:[%s0 + $0x78] sm:$0xff]
    %v31 = vld [vmem:[%s1] sm:$0xff]
    %v32 = vld [vmem:[%s1 + $0x8] sm:$0xff]
    %vm33 = vcmask 64512
    %v35 = vsel %vm33, %v15, 0
    %v38 = vsel %vm33, %v16, 0
    %v41 = vsel %vm33, %v17, 0
    %v44 = vsel %vm33, %v18, 0
    %v47 = vsel %vm33, %v19, 0
    %v50 = vsel %vm33, %v20, 0
    %v53 = vsel %vm33, %v21, 0
    %v56 = vsel %vm33, %v22, 0
    %v59 = vsel %vm33, %v23, 0
    %v62 = vsel %vm33, %v24, 0
    %v65 = vsel %vm33, %v25, 0
    %v68 = vsel %vm33, %v26, 0
    %v71 = vsel %vm33, %v27, 0
    %v74 = vsel %vm33, %v28, 0
    %v77 = vsel %vm33, %v29, 0
    %v80 = vsel %vm33, %v30, 0
    %82 = vmatpush.msra.mxu0 0.0
    %83 = vmatpush.msra.mxu0 0.0
    %84 = vmatpush.msra.mxu0 0.0
    %85 = vmatpush.msra.mxu0 0.0
    %86 = vmatpush.msra.mxu0 0.0
    %87 = vmatpush.msra.mxu0 0.0
    %88 = vmatpush.msra.mxu0 0.0
    %89 = vmatpush.msra.mxu0 0.0
    %90 = vmatpush.msra.mxu0 0.0
    %91 = vmatpush.msra.mxu0 0.0
    %92 = vmatpush.msra.mxu0 0.0
    %93 = vmatpush.msra.mxu0 0.0
    %94 = vmatpush.msra.mxu0 0.0
    %95 = vmatpush.msra.mxu0 0.0
    %96 = vmatpush.msra.mxu0 0.0
    %97 = vmatpush.msra.mxu0 %v31
    %98 = vmatmul.f32.gmra.mxu0 %v35
    %v99 = vpop.f32.mrf.mxu0
    %v100 = vadd.f32 0.0, %v99
    %101 = vmatmul.f32.gmra.mxu0 %v38
    %v102 = vpop.f32.mrf.mxu0
    %v103 = vadd.f32 0.0, %v102
    %104 = vmatmul.f32.gmra.mxu0 %v41
    %v105 = vpop.f32.mrf.mxu0
    %v106 = vadd.f32 0.0, %v105
    %107 = vmatmul.f32.gmra.mxu0 %v44
    %v108 = vpop.f32.mrf.mxu0
    %v109 = vadd.f32 0.0, %v108
    %110 = vmatmul.f32.gmra.mxu0 %v47
    %v111 = vpop.f32.mrf.mxu0
    %v112 = vadd.f32 0.0, %v111
    %113 = vmatmul.f32.gmra.mxu0 %v50
    %v114 = vpop.f32.mrf.mxu0
    %v115 = vadd.f32 0.0, %v114
    %116 = vmatmul.f32.gmra.mxu0 %v53
    %v117 = vpop.f32.mrf.mxu0
    %v118 = vadd.f32 0.0, %v117
    %119 = vmatmul.f32.gmra.mxu0 %v56
    %v120 = vpop.f32.mrf.mxu0
    %v121 = vadd.f32 0.0, %v120
    %122 = vmatmul.f32.gmra.mxu0 %v59
    %v123 = vpop.f32.mrf.mxu0
    %v124 = vadd.f32 0.0, %v123
    %125 = vmatmul.f32.gmra.mxu0 %v62
    %v126 = vpop.f32.mrf.mxu0
    %v127 = vadd.f32 0.0, %v126
    %128 = vmatmul.f32.gmra.mxu0 %v65
    %v129 = vpop.f32.mrf.mxu0
    %v130 = vadd.f32 0.0, %v129
    %131 = vmatmul.f32.gmra.mxu0 %v68
    %v132 = vpop.f32.mrf.mxu0
    %v133 = vadd.f32 0.0, %v132
    %134 = vmatmul.f32.gmra.mxu0 %v71
    %v135 = vpop.f32.mrf.mxu0
    %v136 = vadd.f32 0.0, %v135
    %137 = vmatmul.f32.gmra.mxu0 %v74
    %v138 = vpop.f32.mrf.mxu0
    %v139 = vadd.f32 0.0, %v138
    %140 = vmatmul.f32.gmra.mxu0 %v77
    %v141 = vpop.f32.mrf.mxu0
    %v142 = vadd.f32 0.0, %v141
    %143 = vmatmul.f32.gmra.mxu0 %v80
    %v144 = vpop.f32.mrf.mxu0
    %v145 = vadd.f32 0.0, %v144
    %146 = vdwg.mxu0
    %147 = vmatpush.msra.mxu0 0.0
    %148 = vmatpush.msra.mxu0 0.0
    %149 = vmatpush.msra.mxu0 0.0
    %150 = vmatpush.msra.mxu0 0.0
    %151 = vmatpush.msra.mxu0 0.0
    %152 = vmatpush.msra.mxu0 0.0
    %153 = vmatpush.msra.mxu0 0.0
    %154 = vmatpush.msra.mxu0 0.0
    %155 = vmatpush.msra.mxu0 0.0
    %156 = vmatpush.msra.mxu0 0.0
    %157 = vmatpush.msra.mxu0 0.0
    %158 = vmatpush.msra.mxu0 0.0
    %159 = vmatpush.msra.mxu0 0.0
    %160 = vmatpush.msra.mxu0 0.0
    %161 = vmatpush.msra.mxu0 0.0
    %162 = vmatpush.msra.mxu0 %v32
    %163 = vmatmul.f32.gmra.mxu0 %v35
    %v164 = vpop.f32.mrf.mxu0
    %v165 = vadd.f32 0.0, %v164
    %166 = vmatmul.f32.gmra.mxu0 %v38
    %v167 = vpop.f32.mrf.mxu0
    %v168 = vadd.f32 0.0, %v167
    %169 = vmatmul.f32.gmra.mxu0 %v41
    %v170 = vpop.f32.mrf.mxu0
    %v171 = vadd.f32 0.0, %v170
    %172 = vmatmul.f32.gmra.mxu0 %v44
    %v173 = vpop.f32.mrf.mxu0
    %v174 = vadd.f32 0.0, %v173
    %175 = vmatmul.f32.gmra.mxu0 %v47
    %v176 = vpop.f32.mrf.mxu0
    %v177 = vadd.f32 0.0, %v176
    %178 = vmatmul.f32.gmra.mxu0 %v50
    %v179 = vpop.f32.mrf.mxu0
    %v180 = vadd.f32 0.0, %v179
    %181 = vmatmul.f32.gmra.mxu0 %v53
    %v182 = vpop.f32.mrf.mxu0
    %v183 = vadd.f32 0.0, %v182
    %184 = vmatmul.f32.gmra.mxu0 %v56
    %v185 = vpop.f32.mrf.mxu0
    %v186 = vadd.f32 0.0, %v185
    %187 = vmatmul.f32.gmra.mxu0 %v59
    %v188 = vpop.f32.mrf.mxu0
    %v189 = vadd.f32 0.0, %v188
    %190 = vmatmul.f32.gmra.mxu0 %v62
    %v191 = vpop.f32.mrf.mxu0
    %v192 = vadd.f32 0.0, %v191
    %193 = vmatmul.f32.gmra.mxu0 %v65
    %v194 = vpop.f32.mrf.mxu0
    %v195 = vadd.f32 0.0, %v194
    %196 = vmatmul.f32.gmra.mxu0 %v68
    %v197 = vpop.f32.mrf.mxu0
    %v198 = vadd.f32 0.0, %v197
    %199 = vmatmul.f32.gmra.mxu0 %v71
    %v200 = vpop.f32.mrf.mxu0
    %v201 = vadd.f32 0.0, %v200
    %202 = vmatmul.f32.gmra.mxu0 %v74
    %v203 = vpop.f32.mrf.mxu0
    %v204 = vadd.f32 0.0, %v203
    %205 = vmatmul.f32.gmra.mxu0 %v77
    %v206 = vpop.f32.mrf.mxu0
    %v207 = vadd.f32 0.0, %v206
    %208 = vmatmul.f32.gmra.mxu0 %v80
    %v209 = vpop.f32.mrf.mxu0
    %v210 = vadd.f32 0.0, %v209
    %211 = vdwg.mxu0
    %v212 = vpack.c.bf16 %v100, %v100
    %v213 = vpack.c.bf16 %v103, %v103
    %v214 = vpack.c.bf16 %v106, %v106
    %v215 = vpack.c.bf16 %v109, %v109
    %v216 = vpack.c.bf16 %v112, %v112
    %v217 = vpack.c.bf16 %v115, %v115
    %v218 = vpack.c.bf16 %v118, %v118
    %v219 = vpack.c.bf16 %v121, %v121
    %v220 = vpack.c.bf16 %v124, %v124
    %v221 = vpack.c.bf16 %v127, %v127
    %v222 = vpack.c.bf16 %v130, %v130
    %v223 = vpack.c.bf16 %v133, %v133
    %v224 = vpack.c.bf16 %v136, %v136
    %v225 = vpack.c.bf16 %v139, %v139
    %v226 = vpack.c.bf16 %v142, %v142
    %v227 = vpack.c.bf16 %v145, %v145
    %228 = vst [vmem:[#allocation2] sm:$0xf] %v212
    %229 = vst [vmem:[#allocation2 + $0x4] sm:$0xf] %v213
    %230 = vst [vmem:[#allocation2 + $0x8] sm:$0xf] %v214
    %231 = vst [vmem:[#allocation2 + $0xc] sm:$0xf] %v215
    %232 = vst [vmem:[#allocation2 + $0x10] sm:$0xf] %v216
    %233 = vst [vmem:[#allocation2 + $0x14] sm:$0xf] %v217
    %234 = vst [vmem:[#allocation2 + $0x18] sm:$0xf] %v218
    %235 = vst [vmem:[#allocation2 + $0x1c] sm:$0xf] %v219
    %236 = vst [vmem:[#allocation2 + $0x20] sm:$0xf] %v220
    %237 = vst [vmem:[#allocation2 + $0x24] sm:$0xf] %v221
    %238 = vst [vmem:[#allocation2 + $0x28] sm:$0xf] %v222
    %239 = vst [vmem:[#allocation2 + $0x2c] sm:$0xf] %v223
    %240 = vst [vmem:[#allocation2 + $0x30] sm:$0xf] %v224
    %241 = vst [vmem:[#allocation2 + $0x34] sm:$0xf] %v225
    %242 = vst [vmem:[#allocation2 + $0x38] sm:$0xf] %v226
    %243 = vst [vmem:[#allocation2 + $0x3c] sm:$0xf] %v227
    %244 = vst [vmem:[#allocation4] sm:$0xff] %v165
    %245 = vst [vmem:[#allocation4 + $0x8] sm:$0xff] %v168
    %246 = vst [vmem:[#allocation4 + $0x10] sm:$0xff] %v171
    %247 = vst [vmem:[#allocation4 + $0x18] sm:$0xff] %v174
    %248 = vst [vmem:[#allocation4 + $0x20] sm:$0xff] %v177
    %249 = vst [vmem:[#allocation4 + $0x28] sm:$0xff] %v180
    %250 = vst [vmem:[#allocation4 + $0x30] sm:$0xff] %v183
    %251 = vst [vmem:[#allocation4 + $0x38] sm:$0xff] %v186
    %252 = vst [vmem:[#allocation4 + $0x40] sm:$0xff] %v189
    %253 = vst [vmem:[#allocation4 + $0x48] sm:$0xff] %v192
    %254 = vst [vmem:[#allocation4 + $0x50] sm:$0xff] %v195
    %255 = vst [vmem:[#allocation4 + $0x58] sm:$0xff] %v198
    %256 = vst [vmem:[#allocation4 + $0x60] sm:$0xff] %v201
    %257 = vst [vmem:[#allocation4 + $0x68] sm:$0xff] %v204
    %258 = vst [vmem:[#allocation4 + $0x70] sm:$0xff] %v207
    %259 = vst [vmem:[#allocation4 + $0x78] sm:$0xff] %v210
    // Predicated region
    $region10: #{tpu_custom_call.1} parent=1 // pred_check
      _
    $region11: #{tpu_custom_call.1} parent=1 // pred_check_branch
      %261 = sbr.rel (0) target = $region13
    $region12: #{tpu_custom_call.1} parent=1 // pred_region
      %263 = vsyncadd [#allocation3], 0
      %s264 = sshll.u32 [#allocation2], 4
      %s265 = int_to_ptr.vmem [resolvable:$true] %s264
      %s266 = sshll.u32 %s2, 4
      %s267 = int_to_ptr.hbm [resolvable:$true] %s266
      %272 = dma.vmem_to_hbm [thread:$0]  %s265, 1024, %s267, [#allocation3], 64, 64, 4
    $region13: #{tpu_custom_call.1} parent=1 // pred_fallthru
      _
    // Predicated region
    $region14: #{tpu_custom_call.1} parent=1 // pred_check
      _
    $region15: #{tpu_custom_call.1} parent=1 // pred_check_branch
      %274 = sbr.rel (0) target = $region17
    $region16: #{tpu_custom_call.1} parent=1 // pred_region
      %276 = vsyncadd [#allocation5], 0
      %s277 = sshll.u32 [#allocation4], 4
      %s278 = int_to_ptr.vmem [resolvable:$true] %s277
      %s279 = sshll.u32 %s3, 4
      %s280 = int_to_ptr.hbm [resolvable:$true] %s279
      %285 = dma.vmem_to_hbm [thread:$0]  %s278, 2048, %s280, [#allocation5], 128, 128, 8
    $region17: #{tpu_custom_call.1} parent=1 // pred_fallthru
      _
    // Predicated region
    $region18: #{tpu_custom_call.1} parent=1 // pred_check
      _
    $region19: #{tpu_custom_call.1} parent=1 // pred_check_branch
      %287 = sbr.rel (0) target = $region21
    $region20: #{tpu_custom_call.1} parent=1 // pred_region
      %289 = dma.done [#allocation3], 1024
    $region21: #{tpu_custom_call.1} parent=1 // pred_fallthru
      _
    // Predicated region
    $region22: #{tpu_custom_call.1} parent=1 // pred_check
      _
    $region23: #{tpu_custom_call.1} parent=1 // pred_check_branch
      %291 = sbr.rel (0) target = $region25
    $region24: #{tpu_custom_call.1} parent=1 // pred_region
      %293 = dma.done [#allocation5], 2048
    $region25: #{tpu_custom_call.1} parent=1 // pred_fallthru
      _
    %294 = vsyncpa [#allocation3], 1
    %295 = vsyncpa [#allocation5], 1

</llo_original>
